<compile_context>
chip_gen: v7x
topology: tpu7x:2x2x1
jax: 0.10.0
libtpu: 0.0.40
codegen_flags: <defaults>
</compile_context>

<pallas_src>
import jax
import jax.numpy as jnp
from jax.experimental import pallas as pl
from jax.experimental.pallas import tpu as pltpu


_LANE = 128


def _round_up(x, m):
    return ((x + m - 1) // m) * m


def _cdiv(a, b):
    return -(-a // b)


def _sublane_align(dtype) -> int:
    # 8 for f32, 16 for bf16, 32 for int8/fp8 (packed sublanes).
    return max(8, 32 // jnp.dtype(dtype).itemsize)


def _vmem_budgets():
    """Return (tile_byte_budget, vmem_limit_bytes), generation aware."""
    try:
        cap = int(pltpu.get_tpu_info().vmem_capacity_bytes)
    except Exception:
        cap = 64 << 20  # assume the smallest per-core VMEM (v7x-like) if query fails
    if cap >= (96 << 20):          # v5e / v6e: 128 MiB physical per core
        return 64 << 20, 96 << 20
    return 32 << 20, 44 << 20      # v7x: 64 MiB physical per TensorCore


def _choose_tiles(M, K, Np, esz, align, budget):
    """Pick (tm, tn). Prefer the full K x Np weight slab resident in VMEM."""
    m_full = _round_up(M, align)

    def fits(tm_, tn_):
        # double-buffered x tile + double-buffered weight tile + double-buffered out tile
        return (2 * tm_ * K + 2 * K * tn_ + 2 * tm_ * tn_) * esz <= budget

    def best_tm(tn_, cap):
        tm_ = _round_up(min(m_full, cap), align)
        while tm_ > align and not fits(tm_, tn_):
            tm_ = _round_up(tm_ // 2, align)
        return tm_ if fits(tm_, tn_) else None

    # 1) preferred: full-width weight slab (1-D effective grid over M).
    tm = best_tm(Np, 2048 if Np <= 4096 else 1024)
    if tm is not None:
        return tm, Np
    # 2) fall back to lane-dense sub-tiles of N (weight re-fetched per N tile).
    for tn in (4096, 2048, 1024, 512, 256, 128):
        if tn < Np and Np % tn == 0:
            tm = best_tm(tn, 1024)
            if tm is not None:
                return tm, tn
    # 3) last resort for pathological shapes.
    return align, Np


def _even_m_tiles(M, tm, align):
    """Nudge tm so the number of M tiles is even (clean 2-TC sharding on v7x)."""
    n0 = _cdiv(M, tm)
    if n0 % 2 == 0 or M <= align:
        return tm
    tm2 = _round_up(_cdiv(M, n0 + 1), align)
    if tm2 >= align and _cdiv(M, tm2) % 2 == 0:
        return tm2
    return tm


def _bottleneck_decoder_kernel(x_ref, w_ref, o_ref):
    # x_ref: (tm, K), w_ref: (K, tn), o_ref: (tm, tn)
    y = jnp.dot(x_ref[...], w_ref[...], preferred_element_type=jnp.float32)
    o_ref[...] = jnp.maximum(y, 0.0).astype(o_ref.dtype)


def bottleneck_decoder(x_2d, w_t, n_out=None):
    """y = relu(x_2d @ w_t)[:, :n_out].

    x_2d: [M, K]   (batch*seq, bottleneck_dim)
    w_t : [K, Np]  pre-transposed (and optionally N-padded to 128) Linear weight
    """
    M, K = x_2d.shape
    K2, Np = w_t.shape
    assert K == K2
    if n_out is None:
        n_out = Np

    dtype = x_2d.dtype
    esz = jnp.dtype(dtype).itemsize
    align = _sublane_align(dtype)
    budget, vmem_limit = _vmem_budgets()

    tm, tn = _choose_tiles(M, K, Np, esz, align, budget)
    tm = _even_m_tiles(M, tm, align)

    m_tiles = _cdiv(M, tm)
    n_tiles = Np // tn

    cost = pl.CostEstimate(
        flops=2 * M * K * Np,
        bytes_accessed=(M * K + K * Np + M * Np) * esz,
        transcendentals=0,
    )

    if n_tiles == 1:
        # Weight fully VMEM-resident; single "parallel" M loop (megacore-friendly).
        grid = (m_tiles,)
        in_specs = [
            pl.BlockSpec((tm, K), lambda i: (i, 0)),
            pl.BlockSpec((K, tn), lambda i: (0, 0)),
        ]
        out_spec = pl.BlockSpec((tm, tn), lambda i: (i, 0))
        dim_sem = ("parallel",)
    else:
        # N outermost so the weight block is constant over the inner M loop.
        grid = (n_tiles, m_tiles)
        in_specs = [
            pl.BlockSpec((tm, K), lambda j, i: (i, 0)),
            pl.BlockSpec((K, tn), lambda j, i: (0, j)),
        ]
        out_spec = pl.BlockSpec((tm, tn), lambda j, i: (i, j))
        dim_sem = ("parallel", "parallel")

    out = pl.pallas_call(
        _bottleneck_decoder_kernel,
        out_shape=jax.ShapeDtypeStruct((M, Np), dtype),
        grid_spec=pltpu.PrefetchScalarGridSpec(
            num_scalar_prefetch=0,
            grid=grid,
            in_specs=in_specs,
            out_specs=out_spec,
        ),
        compiler_params=pltpu.CompilerParams(
            dimension_semantics=dim_sem,
            vmem_limit_bytes=vmem_limit,
        ),
        cost_estimate=cost,
    )(x_2d, w_t)

    if n_out != Np:
        out = out[:, :n_out]
    return out


class BottleneckDecoderPallas:
    """JAX/Pallas equivalent of the PyTorch BottleneckDecoder module."""

    def __init__(self, bottleneck_dim: int, emb_dim: int, dtype=jnp.float32, key=None):
        if key is None:
            key = jax.random.PRNGKey(42)
        # torch.nn.Linear default init: U(-1/sqrt(fan_in), 1/sqrt(fan_in)),
        # weight shape [emb_dim, bottleneck_dim].
        bound = 1.0 / (bottleneck_dim ** 0.5)
        self.weight = jax.random.uniform(
            key, (emb_dim, bottleneck_dim), dtype=jnp.float32,
            minval=-bound, maxval=bound,
        ).astype(dtype)
        # Pre-transposed [K, N], zero-padded along N to a multiple of 128 so the
        # kernel's output stores are lane-dense (unmasked vst). Done once at init.
        n_padded = _round_up(emb_dim, _LANE)
        w_t = jnp.asarray(self.weight.T)
        if n_padded != emb_dim:
            w_t = jnp.pad(w_t, ((0, 0), (0, n_padded - emb_dim)))
        self.weight_t = w_t
        self.bottleneck_dim = bottleneck_dim
        self.emb_dim = emb_dim
        self.dtype = dtype

    def __call__(self, x):
        # x: [..., bottleneck_dim] -> [..., emb_dim]
        orig_shape = x.shape
        x2d = x.reshape(-1, self.bottleneck_dim).astype(self.dtype)
        y2d = bottleneck_decoder(x2d, self.weight_t, n_out=self.emb_dim)
        return y2d.reshape(*orig_shape[:-1], self.emb_dim)


if __name__ == "__main__":
    key = jax.random.PRNGKey(0)
    k_x, k_w, k_x2, k_w2, k_x3, k_w3 = jax.random.split(key, 6)

    # 1) Small demo shapes consistent with the module (emb_dim=64 exercises the
    #    N->128 padding + lane-dense store path).
    batch, seq = 2, 8
    bottleneck_dim, emb_dim = 32, 64
    x = jax.random.normal(k_x, (batch, seq, bottleneck_dim), dtype=jnp.float32)
    module = BottleneckDecoderPallas(bottleneck_dim, emb_dim, dtype=jnp.float32, key=k_w)
    y = jax.block_until_ready(module(x))
    y_ref = jnp.maximum(x @ module.weight.T, 0.0)
    assert y.shape == (batch, seq, emb_dim)
    assert jnp.allclose(y, y_ref, atol=1e-5, rtol=1e-5), "mismatch vs reference (small)"

    # 2) Non-divisible M exercises the cdiv grid + masked last-row-block path
    #    (no padding / slicing of the output rows).
    bottleneck_dim2, emb_dim2 = 48, 256
    module2 = BottleneckDecoderPallas(bottleneck_dim2, emb_dim2, dtype=jnp.float32, key=k_w2)
    x2 = jax.random.normal(k_x2, (300, bottleneck_dim2), dtype=jnp.float32)
    y2 = jax.block_until_ready(module2(x2))
    y2_ref = jnp.maximum(x2 @ module2.weight.T, 0.0)
    assert y2.shape == (300, emb_dim2)
    assert jnp.allclose(y2, y2_ref, atol=1e-4, rtol=1e-4), "mismatch vs reference (tiled)"

    # 3) bf16 path (bf16 weights + output, f32 MXU accumulate).
    bottleneck_dim3, emb_dim3 = 32, 256
    module3 = BottleneckDecoderPallas(bottleneck_dim3, emb_dim3, dtype=jnp.bfloat16, key=k_w3)
    x3 = jax.random.normal(k_x3, (4, 16, bottleneck_dim3), dtype=jnp.bfloat16)
    y3 = jax.block_until_ready(module3(x3))
    y3_ref = jnp.maximum(
        x3.astype(jnp.float32) @ module3.weight.astype(jnp.float32).T, 0.0
    )
    assert y3.shape == (4, 16, emb_dim3)
    assert jnp.allclose(y3.astype(jnp.float32), y3_ref, atol=5e-2, rtol=5e-2), \
        "mismatch vs reference (bf16)"

    print("KERNEL_OK")
</pallas_src>

<mosaic_0001>
module attributes {stable_mosaic.version = 11 : i64} {
  func.func @_bottleneck_decoder_kernel(%arg0: i32, %arg1: memref<8x32xf32, #tpu.memory_space<vmem>>, %arg2: memref<32x128xf32, #tpu.memory_space<vmem>>, %arg3: memref<8x128xf32, #tpu.memory_space<vmem>>) attributes {dimension_semantics = [#tpu.dimension_semantics<parallel>], iteration_bounds = array<i64: 2>, scalar_prefetch = 0 : i64, scratch_operands = 0 : i64, tpu.core_type = #tpu.core_type<tc>, window_params = [{transform_indices = @transform_0, window_bounds = array<i64: 8, 32>}, {pipeline_mode = #tpu.pipeline_mode<synchronous>, transform_indices = @transform_1, window_bounds = array<i64: 32, 128>}, {transform_indices = @transform_2, window_bounds = array<i64: 8, 128>}]} {
    %c0 = arith.constant 0 : index
    %c0_0 = arith.constant 0 : index
    %0 = vector.load %arg1[%c0, %c0_0] : memref<8x32xf32, #tpu.memory_space<vmem>>, vector<8x32xf32>
    %c0_1 = arith.constant 0 : index
    %c0_2 = arith.constant 0 : index
    %1 = vector.load %arg2[%c0_1, %c0_2] : memref<32x128xf32, #tpu.memory_space<vmem>>, vector<32x128xf32>
    %cst = arith.constant dense<0.000000e+00> : vector<8x128xf32>
    %2 = tpu.matmul %0, %1, %cst {dimension_numbers = #tpu.dot_dimension_numbers<[1], [0], [0], [1], [0, 0, 1, 1], [], []>} : vector<8x32xf32>, vector<32x128xf32>, vector<8x128xf32> -> vector<8x128xf32>
    %cst_3 = arith.constant 0.000000e+00 : f32
    %3 = vector.broadcast %cst_3 : f32 to vector<8x128xf32>
    %4 = arith.maximumf %2, %3 : vector<8x128xf32>
    %c0_4 = arith.constant 0 : index
    %c0_5 = arith.constant 0 : index
    %5 = vector.load %arg3[%c0_4, %c0_5] : memref<8x128xf32, #tpu.memory_space<vmem>>, vector<8x128xf32>
    tpu.vector_store %arg3[%c0_4, %c0_5], %4 {strides = array<i32>} : memref<8x128xf32, #tpu.memory_space<vmem>>, vector<8x128xf32>,
    return
  }
  func.func @transform_0(%arg0: i32) -> (i32, i32) {
    %c0_i32 = arith.constant 0 : i32
    %c0_i32_0 = arith.constant 0 : i32
    return %arg0, %c0_i32 : i32, i32
  }
  func.func @transform_1(%arg0: i32) -> (i32, i32) {
    %c0_i32 = arith.constant 0 : i32
    %c0_i32_0 = arith.constant 0 : i32
    %c0_i32_1 = arith.constant 0 : i32
    return %c0_i32, %c0_i32_0 : i32, i32
  }
  func.func @transform_2(%arg0: i32) -> (i32, i32) {
    %c0_i32 = arith.constant 0 : i32
    %c0_i32_0 = arith.constant 0 : i32
    return %arg0, %c0_i32 : i32, i32
  }
}

</mosaic_0001>

<llo_original>
// kernel: tpu_custom_call.1
$region0: #{tpu_custom_call.1}
  #allocation0 [shape = 'u32[]', space=smem, size = 0x4, offset = 0x4, fixed_abs, tag = 'smem constant byte address 0x4 - core index']
  #allocation1 [shape = 'u32[144,128]{1,0:T(1,128)}', space=vmem, size = 0x12000, scoped, tag = 'internal scratch']
  %s0 = inlined_call_operand.hbm [shape: f32[16,32], index: 0, kind: input, shape index: {}]
  %s1 = inlined_call_operand.hbm [shape: f32[32,128], index: 1, kind: input, shape index: {}]
  %s2 = inlined_call_operand.hbm [shape: f32[16,128], index: 2, kind: output, shape index: {}]
  %s3 = sld [smem:[#allocation0]]
  $region49: #{tpu_custom_call.1} parent=0
    _
  %s5 = ssub.s32 1, %s3
  %s6 = scalar_select 0, %s5, %s3
  $region1: #{tpu_custom_call.1} parent=0
    #allocation2 [shape = 'u8[8192]{0}', space=vmem, size = 0x2000, scoped, tag = 'input window, operand 0']
    #allocation3 [shape = 's32[2]{0}', space=sflag, size = 0x8, scoped, tag = 'scoped memory for tpu_custom_call.1']
    #allocation4 [shape = 's32[2]{0}', space=sflag, size = 0x8, scoped, tag = 'scoped memory for tpu_custom_call.1']
    #allocation5 [shape = 'u8[16384]{0}', space=vmem, size = 0x4000, scoped, tag = 'input window, operand 1, single buffered']
    #allocation6 [shape = 's32[1]{0}', space=sflag, size = 0x4, scoped, tag = 'scoped memory for tpu_custom_call.1']
    #allocation7 [shape = 'u8[8192]{0}', space=vmem, size = 0x2000, scoped, tag = 'output window, operand 0']
    %7 = vsyncpa [#allocation3], 0
    %s8 = scalar_lea.sflag [#allocation3], 1
    %9 = vsyncpa %s8, 0
    %10 = vsyncpa [#allocation6], 0
    %11 = vsyncpa [#allocation4], 0
    %s12 = scalar_lea.sflag [#allocation4], 1
    %13 = vsyncpa %s12, 0
    loop: start=0, step=1, limit=4
    $region2: #{tpu_custom_call.1} parent=1 // loop_pre_header
      _
    $region3: #{tpu_custom_call.1} parent=1 // loop_header
      %s15 = sphi 0, %s19
      %p16 = scmp.ge.s32.totalorder %s15, 4
      %s25 = sphi 0, %s27
      %s28 = sphi 0, %s25
      %s29 = sphi 0, %s28
      %s45 = sphi 0, %s29
      %s49 = sphi 0, %s49
      %s51 = sphi 0, %s49
      %s52 = sphi 0, %s51
      %s66 = sphi 0, %s52
      %s72 = sphi 0, %s74
      %s75 = sphi 0, %s72
      %s76 = sphi 0, %s75
      %s92 = sphi 0, %s76
    $region4: #{tpu_custom_call.1} parent=1 // loop_header_branch
      %18 = sbr.rel (%p16) target = $region8
    $region5: #{tpu_custom_call.1} parent=1 // loop_body
      %s20 = ssub.s32 %s15, 1
      %s21 = ssub.s32 %s15, 2
      %s22 = sadd.s32 %s15, 1
      %s23 = ssub.s32 %s15, %s22
      %p24 = scmp.eq.s32.totalorder %s23, 0
      %s26 = sadd.s32 %s25, 1
      %s27 = scalar_select %p24, %s25, %s26
      %p30 = pneg %p24
      %p31 = scmp.eq.s32.totalorder %s15, 1
      %p32 = por %p30, %p31
      %p33 = scmp.ne.s32.totalorder %s25, %s28
      %p34 = scmp.eq.s32.totalorder %s15, 0
      %p35 = por %p33, %p34
      %p36 = scmp.ne.s32.totalorder %s25, %s28
      %p37 = scmp.eq.s32.totalorder %s20, 1
      %p38 = por %p36, %p37
      %p39 = scmp.ne.s32.totalorder %s28, %s29
      %p40 = scmp.eq.s32.totalorder %s20, 0
      %p41 = por %p39, %p40
      %p42 = scmp.ne.s32.totalorder %s28, %s29
      %p43 = scmp.eq.s32.totalorder %s21, 1
      %p44 = por %p42, %p43
      %p46 = scmp.ne.s32.totalorder %s29, %s45
      %p47 = scmp.eq.s32.totalorder %s21, 0
      %p48 = por %p46, %p47
      %s50 = sadd.s32 %s49, 1
      %p53 = scmp.eq.s32.totalorder %s15, 1
      %p54 = scmp.ne.s32.totalorder %s49, %s51
      %p55 = scmp.eq.s32.totalorder %s15, 0
      %p56 = por %p54, %p55
      %p57 = scmp.ne.s32.totalorder %s49, %s51
      %p58 = scmp.eq.s32.totalorder %s20, 1
      %p59 = por %p57, %p58
      %p60 = scmp.ne.s32.totalorder %s51, %s52
      %p61 = scmp.eq.s32.totalorder %s20, 0
      %p62 = por %p60, %p61
      %p63 = scmp.ne.s32.totalorder %s51, %s52
      %p64 = scmp.eq.s32.totalorder %s21, 1
      %p65 = por %p63, %p64
      %p67 = scmp.ne.s32.totalorder %s52, %s66
      %p68 = scmp.eq.s32.totalorder %s21, 0
      %p69 = por %p67, %p68
      %s70 = ssub.s32 %s15, %s22
      %p71 = scmp.eq.s32.totalorder %s70, 0
      %s73 = sadd.s32 %s72, 1
      %s74 = scalar_select %p71, %s72, %s73
      %p77 = pneg %p71
      %p78 = scmp.eq.s32.totalorder %s15, 1
      %p79 = por %p77, %p78
      %p80 = scmp.ne.s32.totalorder %s72, %s75
      %p81 = scmp.eq.s32.totalorder %s15, 0
      %p82 = por %p80, %p81
      %p83 = scmp.ne.s32.totalorder %s72, %s75
      %p84 = scmp.eq.s32.totalorder %s20, 1
      %p85 = por %p83, %p84
      %p86 = scmp.ne.s32.totalorder %s75, %s76
      %p87 = scmp.eq.s32.totalorder %s20, 0
      %p88 = por %p86, %p87
      %p89 = scmp.ne.s32.totalorder %s75, %s76
      %p90 = scmp.eq.s32.totalorder %s21, 1
      %p91 = por %p89, %p90
      %p93 = scmp.ne.s32.totalorder %s76, %s92
      %p94 = scmp.eq.s32.totalorder %s21, 0
      %p95 = por %p93, %p94
      %p96 = scmp.le.s32.totalorder 1, %s15
      %p97 = scmp.lt.s32.totalorder %s15, 3
      %p98 = pnand %p96, %p97
      %p99 = pneg %p98
      // Predicated region
      $region9: #{tpu_custom_call.1} parent=5 // pred_check
        _
      $region10: #{tpu_custom_call.1} parent=5 // pred_check_branch
        %101 = sbr.rel (%p98) target = $region12
      $region11: #{tpu_custom_call.1} parent=5 // pred_region
        %s102 = ssub.s32 %s15, 1
        // Predicated region
        $region13: #{tpu_custom_call.1} parent=11 // pred_check
          %p103 = pneg %p62
        $region14: #{tpu_custom_call.1} parent=11 // pred_check_branch
          %105 = sbr.rel (%p103) target = $region16
        $region15: #{tpu_custom_call.1} parent=11 // pred_region
          %s107 = ssub.s32 512, 512
          %108 = vsyncadd [#allocation6], %s107
          %s109 = sshll.u32 [#allocation5], 4
          %s110 = int_to_ptr.vmem [resolvable:$true] %s109
          %115 = dma.hbm_to_vmem [thread:$0]  %s1, 512, %s110, [#allocation6], 128, 128, 8
        $region16: #{tpu_custom_call.1} parent=11 // pred_fallthru
          _
      $region12: #{tpu_custom_call.1} parent=5 // pred_fallthru
        _
      %p116 = scmp.lt.s32.totalorder %s15, 2
      // Predicated region
      $region17: #{tpu_custom_call.1} parent=5 // pred_check
        %p117 = pneg %p116
      $region18: #{tpu_custom_call.1} parent=5 // pred_check_branch
        %119 = sbr.rel (%p117) target = $region20
      $region19: #{tpu_custom_call.1} parent=5 // pred_region
        // Predicated region
        $region21: #{tpu_custom_call.1} parent=19 // pred_check
          %p120 = pneg %p35
        $region22: #{tpu_custom_call.1} parent=19 // pred_check_branch
          %122 = sbr.rel (%p120) target = $region24
        $region23: #{tpu_custom_call.1} parent=19 // pred_region
          %s123 = sand.u32 %s25, 1
          %s124 = scalar_lea.sflag [#allocation3], %s123
          %s125 = sand.u32 %s25, 1
          %s126 = smul.addr %s125, 8
          %s127 = scalar_lea.vmem [#allocation2], %s126
          %s129 = ssub.s32 128, 128
          %130 = vsyncadd %s124, %s129
          %s131 = smul.addr %s15, 128
          %s132 = scalar_lea.hbm %s0, %s131
          %s134 = sshll.u32 %s127, 4
          %s135 = int_to_ptr.vmem [resolvable:$true] %s134
          %137 = dma.hbm_to_vmem [thread:$0]  %s132, 128, %s135, %s124
        $region24: #{tpu_custom_call.1} parent=19 // pred_fallthru
          _
      $region20: #{tpu_custom_call.1} parent=5 // pred_fallthru
        _
      %p138 = scmp.le.s32.totalorder 1, %s15
      %p139 = scmp.lt.s32.totalorder %s15, 3
      %p140 = pnand %p138, %p139
      %p141 = pneg %p140
      // Predicated region
      $region25: #{tpu_custom_call.1} parent=5 // pred_check
        _
      $region26: #{tpu_custom_call.1} parent=5 // pred_check_branch
        %143 = sbr.rel (%p140) target = $region28
      $region27: #{tpu_custom_call.1} parent=5 // pred_region
        %s144 = ssub.s32 %s15, 1
        %s145 = sand.u32 %s28, 1
        %s146 = scalar_lea.sflag [#allocation3], %s145
        %s147 = sand.u32 %s28, 1
        %s148 = smul.addr %s147, 8
        %s149 = scalar_lea.vmem [#allocation2], %s148
        // Predicated region
        $region29: #{tpu_custom_call.1} parent=27 // pred_check
          %p150 = pneg %p41
        $region30: #{tpu_custom_call.1} parent=27 // pred_check_branch
          %152 = sbr.rel (%p150) target = $region32
        $region31: #{tpu_custom_call.1} parent=27 // pred_region
          %153 = dma.done %s146, 128
        $region32: #{tpu_custom_call.1} parent=27 // pred_fallthru
          _
        // Predicated region
        $region33: #{tpu_custom_call.1} parent=27 // pred_check
          %p154 = pneg %p62
        $region34: #{tpu_custom_call.1} parent=27 // pred_check_branch
          %156 = sbr.rel (%p154) target = $region36
        $region35: #{tpu_custom_call.1} parent=27 // pred_region
          %157 = dma.done [#allocation6], 512
        $region36: #{tpu_custom_call.1} parent=27 // pred_fallthru
          _
        %s158 = sand.u32 %s28, 1
        %s159 = scalar_lea.sflag [#allocation3], %s158
        %s160 = sand.u32 %s28, 1
        %s161 = smul.addr %s160, 8
        %s162 = scalar_lea.vmem [#allocation2], %s161
        %p163 = pneg %p41
        %p164 = pneg %p38
        %p165 = pneg %p62
        %p166 = pneg %p59
        %p167 = pneg %p88
        %p168 = pneg %p85
        %s169 = sand.u32 %s75, 1
        %s170 = scalar_lea.sflag [#allocation4], %s169
        %s171 = sand.u32 %s75, 1
        %s172 = smul.addr %s171, 8
        %s173 = scalar_lea.vmem [#allocation7], %s172
        %v174 = vld [vmem:[%s149] sm:$0xff]
        %v175 = vld [vmem:[#allocation5] sm:$0xff]
        %v176 = vld [vmem:[#allocation5 + $0x8] sm:$0xff]
        %v177 = vld [vmem:[#allocation5 + $0x10] sm:$0xff]
        %v178 = vld [vmem:[#allocation5 + $0x18] sm:$0xff]
        %vm179 = vcmask 261120
        %v181 = vsel %vm179, %v174, 0
        %183 = vmatprep.subr.mxu0 0.0
        %184 = vmatpush1.msra.mxu0 %v175
        %185 = vmatprep.subr.mxu0 0.0
        %186 = vmatpush1.msra.mxu0 %v176
        %187 = vmatprep.subr.mxu0 0.0
        %188 = vmatpush1.msra.mxu0 %v177
        %189 = vmatprep.subr.mxu0 0.0
        %190 = vmatpush1.msra.mxu0 %v178
        %191 = vmatprep.subr.mxu0 0.0
        %192 = vmatpush1.msra.mxu0 0.0
        %193 = vmatprep.subr.mxu0 0.0
        %194 = vmatpush1.msra.mxu0 0.0
        %195 = vmatprep.subr.mxu0 0.0
        %196 = vmatpush1.msra.mxu0 0.0
        %197 = vmatprep.subr.mxu0 0.0
        %198 = vmatpush1.msra.mxu0 0.0
        %199 = vmatprep.subr.mxu0 0.0
        %200 = vmatpush1.msra.mxu0 0.0
        %201 = vmatprep.subr.mxu0 0.0
        %202 = vmatpush1.msra.mxu0 0.0
        %203 = vmatprep.subr.mxu0 0.0
        %204 = vmatpush1.msra.mxu0 0.0
        %205 = vmatprep.subr.mxu0 0.0
        %206 = vmatpush1.msra.mxu0 0.0
        %207 = vmatprep.subr.mxu0 0.0
        %208 = vmatpush1.msra.mxu0 0.0
        %209 = vmatprep.subr.mxu0 0.0
        %210 = vmatpush1.msra.mxu0 0.0
        %211 = vmatprep.subr.mxu0 0.0
        %212 = vmatpush1.msra.mxu0 0.0
        %213 = vmatprep.subr.mxu0 0.0
        %214 = vmatpush1.msra.mxu0 0.0
        %215 = vmatprep.subr.mxu0 0.0
        %216 = vmatpush1.msra.mxu0 0.0
        %217 = vmatprep.subr.mxu0 0.0
        %218 = vmatpush1.msra.mxu0 0.0
        %219 = vmatprep.subr.mxu0 0.0
        %220 = vmatpush1.msra.mxu0 0.0
        %221 = vmatprep.subr.mxu0 0.0
        %222 = vmatpush1.msra.mxu0 0.0
        %223 = vmatprep.subr.mxu0 0.0
        %224 = vmatpush1.msra.mxu0 0.0
        %225 = vmatprep.subr.mxu0 0.0
        %226 = vmatpush1.msra.mxu0 0.0
        %227 = vmatprep.subr.mxu0 0.0
        %228 = vmatpush1.msra.mxu0 0.0
        %229 = vmatprep.subr.mxu0 0.0
        %230 = vmatpush1.msra.mxu0 0.0
        %231 = vmatprep.subr.mxu0 0.0
        %232 = vmatpush1.msra.mxu0 0.0
        %233 = vmatprep.subr.mxu0 0.0
        %234 = vmatpush1.msra.mxu0 0.0
        %235 = vmatprep.subr.mxu0 0.0
        %236 = vmatpush1.msra.mxu0 0.0
        %237 = vmatprep.subr.mxu0 0.0
        %238 = vmatpush1.msra.mxu0 0.0
        %239 = vmatprep.subr.mxu0 0.0
        %240 = vmatpush1.msra.mxu0 0.0
        %241 = vmatprep.subr.mxu0 0.0
        %242 = vmatpush1.msra.mxu0 0.0
        %243 = vmatprep.subr.mxu0 0.0
        %244 = vmatpush1.msra.mxu0 0.0
        %245 = vmatprep.subr.mxu0 0.0
        %246 = vmatpush1.msra.mxu0 0.0
        %247 = vmatprep.mubr.f32.mxu0 0.0
        %248 = vmatmul.mubr.f32.gmra.mrb[0].mxu0 %v181
        %v249 = vpop.f32.mrb[0].mxu0
        %v250 = vadd.f32 0.0, %v249
        %v251 = vpop.f32.mrb[0].mxu0
        %252 = vdwg.mxu0
        %v253 = vmax.f32 %v250, 0.0
        %254 = vst [vmem:[%s173] sm:$0xff] %v253
        %s255 = sand.u32 %s75, 1
        %s256 = scalar_lea.sflag [#allocation4], %s255
        %s257 = sand.u32 %s75, 1
        %s258 = smul.addr %s257, 8
        %s259 = scalar_lea.vmem [#allocation7], %s258
        // Predicated region
        $region37: #{tpu_custom_call.1} parent=27 // pred_check
          %p260 = pneg %p85
        $region38: #{tpu_custom_call.1} parent=27 // pred_check_branch
          %262 = sbr.rel (%p260) target = $region40
        $region39: #{tpu_custom_call.1} parent=27 // pred_region
          %s264 = ssub.s32 128, 128
          %265 = vsyncadd %s256, %s264
          %s266 = smul.addr %s20, 128
          %s267 = scalar_lea.hbm %s2, %s266
          %s269 = sshll.u32 %s259, 4
          %s270 = int_to_ptr.vmem [resolvable:$true] %s269
          %272 = dma.vmem_to_hbm [thread:$0]  %s270, 128, %s267, %s256
        $region40: #{tpu_custom_call.1} parent=27 // pred_fallthru
          _
      $region28: #{tpu_custom_call.1} parent=5 // pred_fallthru
        _
      %p273 = scmp.le.s32.totalorder 2, %s15
      // Predicated region
      $region41: #{tpu_custom_call.1} parent=5 // pred_check
        %p274 = pneg %p273
      $region42: #{tpu_custom_call.1} parent=5 // pred_check_branch
        %276 = sbr.rel (%p274) target = $region44
      $region43: #{tpu_custom_call.1} parent=5 // pred_region
        %s277 = ssub.s32 %s15, 2
        // Predicated region
        $region45: #{tpu_custom_call.1} parent=43 // pred_check
          %p278 = pneg %p91
        $region46: #{tpu_custom_call.1} parent=43 // pred_check_branch
          %280 = sbr.rel (%p278) target = $region48
        $region47: #{tpu_custom_call.1} parent=43 // pred_region
          %s281 = sand.u32 %s76, 1
          %s282 = scalar_lea.sflag [#allocation4], %s281
          %s283 = sand.u32 %s76, 1
          %s284 = smul.addr %s283, 8
          %s285 = scalar_lea.vmem [#allocation7], %s284
          %286 = dma.done %s282, 128
        $region48: #{tpu_custom_call.1} parent=43 // pred_fallthru
          _
      $region44: #{tpu_custom_call.1} parent=5 // pred_fallthru
        _
    $region6: #{tpu_custom_call.1} parent=1 // loop_footer
      %s19 = sadd.s32 1, %s15
    $region7: #{tpu_custom_call.1} parent=1 // loop_footer_branch
      %14 = sbr.rel target = $region3
    $region8: #{tpu_custom_call.1} parent=1 // loop_exit
      _
    %287 = vsyncpa [#allocation3], 1
    %s288 = scalar_lea.sflag [#allocation3], 1
    %289 = vsyncpa %s288, 1
    %290 = vsyncpa [#allocation6], 1
    %291 = vsyncpa [#allocation4], 1
    %s292 = scalar_lea.sflag [#allocation4], 1
    %293 = vsyncpa %s292, 1

</llo_original>
